<compile_context>
chip_gen: v7x
topology: tpu7x:2x2x1
jax: 0.10.0
libtpu: 0.0.40
codegen_flags: <defaults>
</compile_context>

<pallas_src>
from functools import partial

import numpy as np
import jax
import jax.numpy as jnp
from jax.experimental import pallas as pl
from jax.experimental.pallas import tpu as pltpu

EMB = 32                  # node / edge embedding width
IN_CH = 3 * EMB           # 96 real input features
IN_PAD = 128              # zero-padded K for a full 128-lane vreg / aligned MXU K
HID = 128
OUT_CH = 1
TM = 128                  # row tile (fills the MXU height on all generations)
E_PAD = 256               # padded number of selected edges (multiple of TM)
NUM_TILES = E_PAD // TM
NEG = -1e30               # f32-safe mask sentinel (softmax stays in f32)


# ----------------------------- Pallas kernel ------------------------------ #
def policy_kernel(x_ref, mask_ref,
                  w1_ref, b1_ref, w2_ref, b2_ref, w3_ref, b3_ref,
                  w4_ref, b4_ref,
                  out_ref, m_sc, l_sc):
    """Fused MLP + masked online log-softmax over all row tiles."""
    i = pl.program_id(0)
    nt = pl.num_programs(0)

    @pl.when(i == 0)
    def _():
        m_sc[...] = jnp.full_like(m_sc, NEG)
        l_sc[...] = jnp.zeros_like(l_sc)

    x = x_ref[...]                                                  # [TM, IN_PAD] bf16
    h = jnp.dot(x, w1_ref[...], preferred_element_type=jnp.float32) + b1_ref[...]
    h = jnp.maximum(h, 0.0)
    h = jnp.dot(h.astype(jnp.bfloat16), w2_ref[...],
                preferred_element_type=jnp.float32) + b2_ref[...]
    h = jnp.maximum(h, 0.0)
    h = jnp.dot(h.astype(jnp.bfloat16), w3_ref[...],
                preferred_element_type=jnp.float32) + b3_ref[...]
    h = jnp.maximum(h, 0.0)                                         # [TM, HID] f32

    # Final 128->1 projection: transpose (XLU) + VPU multiply + sublane reduce.
    # Avoids an N=1 MXU matmul and yields a lane-dense [1, TM] logits row.
    hT = jnp.transpose(h)                                           # [HID, TM]
    logits = jnp.sum(hT * w4_ref[...], axis=0, keepdims=True) + b4_ref[...]   # [1, TM]

    mask = mask_ref[...]                                            # [1, TM]
    masked = jnp.where(mask > 0.0, logits, jnp.full_like(logits, NEG))

    # Online (flash-style) max / sum-of-exp accumulation across row tiles (f32).
    t_max = jnp.max(masked, axis=-1, keepdims=True)                 # [1, 1]
    m_new = jnp.maximum(m_sc[...], t_max)
    p = jnp.exp(masked - m_new) * mask
    l_sc[...] = l_sc[...] * jnp.exp(m_sc[...] - m_new) + jnp.sum(p, axis=-1, keepdims=True)
    m_sc[...] = m_new

    # Stash this tile's masked logits into the resident lane-dense output.
    out_ref[pl.ds(i, 1), :] = masked

    # Finalize: convert stored logits to log-softmax once all tiles are seen.
    @pl.when(i == nt - 1)
    def _():
        out_ref[...] = out_ref[...] - (m_sc[...] + jnp.log(l_sc[...]))


def run_policy_mlp(x_bf16, mask_row, params):
    """x_bf16: [E_PAD, IN_PAD] bf16; mask_row: [1, E_PAD] f32.
    Returns [NUM_TILES, TM] f32 log-softmax (padded lanes ~ -1e30)."""
    const = lambda i: (0, 0)
    return pl.pallas_call(
        policy_kernel,
        out_shape=jax.ShapeDtypeStruct((NUM_TILES, TM), jnp.float32),
        grid_spec=pltpu.PrefetchScalarGridSpec(
            num_scalar_prefetch=0,
            grid=(NUM_TILES,),
            in_specs=[
                pl.BlockSpec((TM, IN_PAD), lambda i: (i, 0)),   # activations (tiled)
                pl.BlockSpec((1, TM), lambda i: (0, i)),        # mask (tiled, lane-dense)
                pl.BlockSpec((IN_PAD, HID), const),             # W1 (resident, bf16)
                pl.BlockSpec((1, HID), const),                  # b1
                pl.BlockSpec((HID, HID), const),                # W2 (resident, bf16)
                pl.BlockSpec((1, HID), const),                  # b2
                pl.BlockSpec((HID, HID), const),                # W3 (resident, bf16)
                pl.BlockSpec((1, HID), const),                  # b3
                pl.BlockSpec((HID, OUT_CH), const),             # w4 column (f32)
                pl.BlockSpec((1, 1), const),                    # b4
            ],
            out_specs=pl.BlockSpec((NUM_TILES, TM), const),     # resident lane-dense out
            scratch_shapes=[pltpu.VMEM((1, 1), jnp.float32),    # running max
                            pltpu.VMEM((1, 1), jnp.float32)],   # running sum-of-exp
        ),
        compiler_params=pltpu.CompilerParams(
            # log-softmax couples all row tiles -> sequential reduction axis.
            dimension_semantics=("arbitrary",)),
    )(x_bf16, mask_row,
      params["w1"], params["b1"], params["w2"], params["b2"],
      params["w3"], params["b3"], params["w4"], params["b4"])


# ------------------------------ parameter init ----------------------------- #
def init_mlp_params(key):
    """PyTorch-Linear-style init: U(-1/sqrt(fan_in), 1/sqrt(fan_in)).
    W1..W3 stored bf16 [in, out]; W1 zero-padded from K=96 to K=128."""
    def linear(k, fan_in, fan_out):
        kw, kb = jax.random.split(k)
        bound = 1.0 / np.sqrt(fan_in)
        w = jax.random.uniform(kw, (fan_in, fan_out), jnp.float32, -bound, bound)
        b = jax.random.uniform(kb, (1, fan_out), jnp.float32, -bound, bound)
        return w, b

    k1, k2, k3, k4 = jax.random.split(key, 4)
    w1, b1 = linear(k1, IN_CH, HID)                          # [96, 128]
    w1 = jnp.zeros((IN_PAD, HID), jnp.float32).at[:IN_CH].set(w1)
    w2, b2 = linear(k2, HID, HID)
    w3, b3 = linear(k3, HID, HID)
    w4, b4 = linear(k4, HID, OUT_CH)                         # [128, 1], [1, 1]
    return dict(
        w1=w1.astype(jnp.bfloat16), b1=b1,
        w2=w2.astype(jnp.bfloat16), b2=b2,
        w3=w3.astype(jnp.bfloat16), b3=b3,
        w4=w4, b4=b4)                                        # last layer kept f32 (VPU path)


# ------------------------------- forward glue ------------------------------ #
@jax.jit
def _policy_compute(node_x, edge_attr, idx_i, idx_j, idx_e, mask_row, op_ids,
                    params, key):
    """All device work (gather, pad, fused kernel, sampling) in one jit."""
    h_i = node_x[idx_i]                                      # [E_PAD, 32]
    h_j = node_x[idx_j]                                      # [E_PAD, 32]
    h_ij = edge_attr[idx_e]                                  # [E_PAD, 32]
    feats = jnp.concatenate([h_i, h_j, h_ij], axis=1)        # [E_PAD, 96]
    x = jnp.zeros((E_PAD, IN_PAD), jnp.float32).at[:, :IN_CH].set(feats)
    x = x * mask_row.T                                       # zero the padded rows
    x = x.astype(jnp.bfloat16)

    logp = run_policy_mlp(x, mask_row, params).reshape(E_PAD)  # log-softmax, padded ~ -1e30

    # Categorical sample directly from log-probs (padded lanes can never win).
    idx = jax.random.categorical(key, logp)
    return op_ids[idx], logp[idx]


def policy_forward(idle_machine, doable_op_id, edge_index, node_x, edge_attr,
                   params, sample_key):
    """Reproduces Policy.forward semantics. Returns (sampled_op, log_prob) as
    device arrays (single host sync deferred to the caller)."""
    # --- host-side edge selection (verbatim numpy logic of the reference) ---
    edge_index_np = np.asarray(edge_index)
    idle_machine_flattened = np.array(idle_machine).repeat(
        repeats=[len(doable_ops_m) for doable_ops_m in doable_op_id])
    doable_op_id_flattened = np.array([op for ops_m in doable_op_id for op in ops_m])
    op_machine_pair = np.stack([doable_op_id_flattened, idle_machine_flattened])
    find_op = np.isin(edge_index_np[0], op_machine_pair[0])
    find_machine = np.isin(edge_index_np[1], op_machine_pair[1])
    which_edge = np.where(np.logical_and(find_op, find_machine))[0]
    pair = edge_index_np[:, which_edge]

    e_sel = int(which_edge.shape[0])
    assert 0 < e_sel <= E_PAD, "increase E_PAD for larger edge counts"

    def pad_idx(a):
        out = np.zeros((E_PAD,), np.int32)
        out[:e_sel] = a
        return out

    idx_i = pad_idx(pair[1])          # machine node indices
    idx_j = pad_idx(pair[0])          # op node indices
    idx_e = pad_idx(which_edge)       # edge indices
    op_ids = pad_idx(pair[0])         # op id to return for each candidate edge
    mask_row = np.zeros((1, E_PAD), np.float32)
    mask_row[0, :e_sel] = 1.0

    sampled_op, log_prob = _policy_compute(
        node_x, edge_attr,
        jnp.asarray(idx_i), jnp.asarray(idx_j), jnp.asarray(idx_e),
        jnp.asarray(mask_row), jnp.asarray(op_ids), params, sample_key)
    return sampled_op, log_prob


# ----------------------------------- main ---------------------------------- #
if __name__ == "__main__":
    root = jax.random.PRNGKey(0)
    k_params, k_x, k_e, k_sample = jax.random.split(root, 4)

    params = init_mlp_params(k_params)

    # Small synthetic JSP graph: 9 operation nodes (0..8) + 3 machine nodes (9..11).
    num_ops, num_machines = 9, 3
    num_nodes = num_ops + num_machines
    node_x = jax.random.normal(k_x, (num_nodes, EMB), jnp.float32)

    # op -> machine edges: op i is processed on machine 9 + (i % 3)
    src_ops = np.arange(num_ops, dtype=np.int32)
    dst_machines = (num_ops + (src_ops % num_machines)).astype(np.int32)
    edge_index = np.stack([src_ops, dst_machines])                 # [2, 9]
    edge_attr = jax.random.normal(k_e, (edge_index.shape[1], EMB), jnp.float32)

    idle_machine = [9, 11]
    doable_op_id = [[0, 3], [2, 8]]

    sampled_op, log_prob = policy_forward(
        idle_machine, doable_op_id, edge_index, node_x, edge_attr,
        params, k_sample)
    jax.block_until_ready(log_prob)            # single host sync

    assert np.isfinite(float(log_prob))
    assert int(sampled_op) in [0, 3, 2, 8]
    print("KERNEL_OK")
</pallas_src>

<mosaic_0001>
module attributes {stable_mosaic.version = 11 : i64} {
  func.func @policy_kernel(%arg0: i32, %arg1: memref<128x128xbf16, #tpu.memory_space<vmem>>, %arg2: memref<1x128xf32, #tpu.memory_space<vmem>>, %arg3: memref<128x128xbf16, #tpu.memory_space<vmem>>, %arg4: memref<1x128xf32, #tpu.memory_space<vmem>>, %arg5: memref<128x128xbf16, #tpu.memory_space<vmem>>, %arg6: memref<1x128xf32, #tpu.memory_space<vmem>>, %arg7: memref<128x128xbf16, #tpu.memory_space<vmem>>, %arg8: memref<1x128xf32, #tpu.memory_space<vmem>>, %arg9: memref<128x1xf32, #tpu.memory_space<vmem>>, %arg10: memref<1x1xf32, #tpu.memory_space<vmem>>, %arg11: memref<2x128xf32, #tpu.memory_space<vmem>>, %arg12: memref<1x1xf32, #tpu.memory_space<vmem>>, %arg13: memref<1x1xf32, #tpu.memory_space<vmem>>) attributes {dimension_semantics = [#tpu.dimension_semantics<arbitrary>], iteration_bounds = array<i64: 2>, scalar_prefetch = 0 : i64, scratch_operands = 2 : i64, tpu.core_type = #tpu.core_type<tc>, window_params = [{transform_indices = @transform_0, window_bounds = array<i64: 128, 128>}, {transform_indices = @transform_1, window_bounds = array<i64: 1, 128>}, {pipeline_mode = #tpu.pipeline_mode<synchronous>, transform_indices = @transform_2, window_bounds = array<i64: 128, 128>}, {pipeline_mode = #tpu.pipeline_mode<synchronous>, transform_indices = @transform_3, window_bounds = array<i64: 1, 128>}, {pipeline_mode = #tpu.pipeline_mode<synchronous>, transform_indices = @transform_4, window_bounds = array<i64: 128, 128>}, {pipeline_mode = #tpu.pipeline_mode<synchronous>, transform_indices = @transform_5, window_bounds = array<i64: 1, 128>}, {pipeline_mode = #tpu.pipeline_mode<synchronous>, transform_indices = @transform_6, window_bounds = array<i64: 128, 128>}, {pipeline_mode = #tpu.pipeline_mode<synchronous>, transform_indices = @transform_7, window_bounds = array<i64: 1, 128>}, {pipeline_mode = #tpu.pipeline_mode<synchronous>, transform_indices = @transform_8, window_bounds = array<i64: 128, 1>}, {pipeline_mode = #tpu.pipeline_mode<synchronous>, transform_indices = @transform_9, window_bounds = array<i64: 1, 1>}, {pipeline_mode = #tpu.pipeline_mode<synchronous>, transform_indices = @transform_10, window_bounds = array<i64: 2, 128>}]} {
    %c0_i32 = arith.constant 0 : i32
    %0 = arith.cmpi eq, %arg0, %c0_i32 : i32
    %1 = arith.extui %0 : i1 to i32
    %c0_i32_0 = arith.constant 0 : i32
    %2 = arith.cmpi ne, %1, %c0_i32_0 : i32
    scf.if %2 {
      %cst_42 = arith.constant -1.000000e+30 : f32
      %64 = vector.broadcast %cst_42 : f32 to vector<1x1xf32>
      %c0_43 = arith.constant 0 : index
      %c0_44 = arith.constant 0 : index
      %65 = vector.load %arg12[%c0_43, %c0_44] : memref<1x1xf32, #tpu.memory_space<vmem>>, vector<1x1xf32>
      tpu.vector_store %arg12[%c0_43, %c0_44], %64 {strides = array<i32>} : memref<1x1xf32, #tpu.memory_space<vmem>>, vector<1x1xf32>,
      %cst_45 = arith.constant 0.000000e+00 : f32
      %66 = vector.broadcast %cst_45 : f32 to vector<1x1xf32>
      %c0_46 = arith.constant 0 : index
      %c0_47 = arith.constant 0 : index
      %67 = vector.load %arg13[%c0_46, %c0_47] : memref<1x1xf32, #tpu.memory_space<vmem>>, vector<1x1xf32>
      tpu.vector_store %arg13[%c0_46, %c0_47], %66 {strides = array<i32>} : memref<1x1xf32, #tpu.memory_space<vmem>>, vector<1x1xf32>,
    } else {
    }
    %c0 = arith.constant 0 : index
    %c0_1 = arith.constant 0 : index
    %3 = vector.load %arg1[%c0, %c0_1] : memref<128x128xbf16, #tpu.memory_space<vmem>>, vector<128x128xbf16>
    %c0_2 = arith.constant 0 : index
    %c0_3 = arith.constant 0 : index
    %4 = vector.load %arg3[%c0_2, %c0_3] : memref<128x128xbf16, #tpu.memory_space<vmem>>, vector<128x128xbf16>
    %cst = arith.constant dense<0.000000e+00> : vector<128x128xf32>
    %5 = tpu.matmul %3, %4, %cst {dimension_numbers = #tpu.dot_dimension_numbers<[1], [0], [0], [1], [0, 0, 1, 1], [], []>} : vector<128x128xbf16>, vector<128x128xbf16>, vector<128x128xf32> -> vector<128x128xf32>
    %c0_4 = arith.constant 0 : index
    %c0_5 = arith.constant 0 : index
    %6 = vector.load %arg4[%c0_4, %c0_5] : memref<1x128xf32, #tpu.memory_space<vmem>>, vector<1x128xf32>
    %7 = vector.broadcast %6 : vector<1x128xf32> to vector<128x128xf32>
    %8 = arith.addf %5, %7 : vector<128x128xf32>
    %cst_6 = arith.constant 0.000000e+00 : f32
    %9 = vector.broadcast %cst_6 : f32 to vector<128x128xf32>
    %10 = arith.maximumf %8, %9 : vector<128x128xf32>
    %11 = arith.truncf %10 : vector<128x128xf32> to vector<128x128xbf16>
    %c0_7 = arith.constant 0 : index
    %c0_8 = arith.constant 0 : index
    %12 = vector.load %arg5[%c0_7, %c0_8] : memref<128x128xbf16, #tpu.memory_space<vmem>>, vector<128x128xbf16>
    %cst_9 = arith.constant dense<0.000000e+00> : vector<128x128xf32>
    %13 = tpu.matmul %11, %12, %cst_9 {dimension_numbers = #tpu.dot_dimension_numbers<[1], [0], [0], [1], [0, 0, 1, 1], [], []>} : vector<128x128xbf16>, vector<128x128xbf16>, vector<128x128xf32> -> vector<128x128xf32>
    %c0_10 = arith.constant 0 : index
    %c0_11 = arith.constant 0 : index
    %14 = vector.load %arg6[%c0_10, %c0_11] : memref<1x128xf32, #tpu.memory_space<vmem>>, vector<1x128xf32>
    %15 = vector.broadcast %14 : vector<1x128xf32> to vector<128x128xf32>
    %16 = arith.addf %13, %15 : vector<128x128xf32>
    %cst_12 = arith.constant 0.000000e+00 : f32
    %17 = vector.broadcast %cst_12 : f32 to vector<128x128xf32>
    %18 = arith.maximumf %16, %17 : vector<128x128xf32>
    %19 = arith.truncf %18 : vector<128x128xf32> to vector<128x128xbf16>
    %c0_13 = arith.constant 0 : index
    %c0_14 = arith.constant 0 : index
    %20 = vector.load %arg7[%c0_13, %c0_14] : memref<128x128xbf16, #tpu.memory_space<vmem>>, vector<128x128xbf16>
    %cst_15 = arith.constant dense<0.000000e+00> : vector<128x128xf32>
    %21 = tpu.matmul %19, %20, %cst_15 {dimension_numbers = #tpu.dot_dimension_numbers<[1], [0], [0], [1], [0, 0, 1, 1], [], []>} : vector<128x128xbf16>, vector<128x128xbf16>, vector<128x128xf32> -> vector<128x128xf32>
    %c0_16 = arith.constant 0 : index
    %c0_17 = arith.constant 0 : index
    %22 = vector.load %arg8[%c0_16, %c0_17] : memref<1x128xf32, #tpu.memory_space<vmem>>, vector<1x128xf32>
    %23 = vector.broadcast %22 : vector<1x128xf32> to vector<128x128xf32>
    %24 = arith.addf %21, %23 : vector<128x128xf32>
    %cst_18 = arith.constant 0.000000e+00 : f32
    %25 = vector.broadcast %cst_18 : f32 to vector<128x128xf32>
    %26 = arith.maximumf %24, %25 : vector<128x128xf32>
    %27 = tpu.transpose %26, [1, 0] : vector<128x128xf32> -> vector<128x128xf32>
    %c0_19 = arith.constant 0 : index
    %c0_20 = arith.constant 0 : index
    %28 = vector.load %arg9[%c0_19, %c0_20] : memref<128x1xf32, #tpu.memory_space<vmem>>, vector<128x1xf32>
    %29 = vector.broadcast %28 : vector<128x1xf32> to vector<128x128xf32>
    %30 = arith.mulf %27, %29 : vector<128x128xf32>
    %cst_21 = arith.constant dense<0.000000e+00> : vector<128xf32>
    %31 = vector.multi_reduction <add>, %30, %cst_21 [0] : vector<128x128xf32> to vector<128xf32>
    %32 = vector.shape_cast %31 : vector<128xf32> to vector<1x128xf32>
    %c0_22 = arith.constant 0 : index
    %c0_23 = arith.constant 0 : index
    %33 = vector.load %arg10[%c0_22, %c0_23] : memref<1x1xf32, #tpu.memory_space<vmem>>, vector<1x1xf32>
    %34 = vector.broadcast %33 : vector<1x1xf32> to vector<1x128xf32>
    %35 = arith.addf %32, %34 : vector<1x128xf32>
    %c0_24 = arith.constant 0 : index
    %c0_25 = arith.constant 0 : index
    %36 = vector.load %arg2[%c0_24, %c0_25] : memref<1x128xf32, #tpu.memory_space<vmem>>, vector<1x128xf32>
    %cst_26 = arith.constant 0.000000e+00 : f32
    %37 = vector.broadcast %cst_26 : f32 to vector<1x128xf32>
    %38 = arith.cmpf ogt, %36, %37 : vector<1x128xf32>
    %cst_27 = arith.constant -1.000000e+30 : f32
    %39 = vector.broadcast %cst_27 : f32 to vector<1x128xf32>
    %40 = arith.select %38, %35, %39 : vector<1x128xi1>, vector<1x128xf32>
    %cst_28 = arith.constant dense<0xFF800000> : vector<1xf32>
    %41 = vector.multi_reduction <maximumf>, %40, %cst_28 [1] : vector<1x128xf32> to vector<1xf32>
    %42 = vector.shape_cast %41 : vector<1xf32> to vector<1x1xf32>
    %c0_29 = arith.constant 0 : index
    %c0_30 = arith.constant 0 : index
    %43 = vector.load %arg12[%c0_29, %c0_30] : memref<1x1xf32, #tpu.memory_space<vmem>>, vector<1x1xf32>
    %44 = arith.maximumf %43, %42 : vector<1x1xf32>
    %45 = vector.broadcast %44 : vector<1x1xf32> to vector<1x128xf32>
    %46 = arith.subf %40, %45 : vector<1x128xf32>
    %47 = math.exp %46 : vector<1x128xf32>
    %48 = arith.mulf %47, %36 : vector<1x128xf32>
    %c0_31 = arith.constant 0 : index
    %c0_32 = arith.constant 0 : index
    %49 = vector.load %arg13[%c0_31, %c0_32] : memref<1x1xf32, #tpu.memory_space<vmem>>, vector<1x1xf32>
    %c0_33 = arith.constant 0 : index
    %c0_34 = arith.constant 0 : index
    %50 = vector.load %arg12[%c0_33, %c0_34] : memref<1x1xf32, #tpu.memory_space<vmem>>, vector<1x1xf32>
    %51 = arith.subf %50, %44 : vector<1x1xf32>
    %52 = math.exp %51 : vector<1x1xf32>
    %53 = arith.mulf %49, %52 : vector<1x1xf32>
    %cst_35 = arith.constant dense<0.000000e+00> : vector<1xf32>
    %54 = vector.multi_reduction <add>, %48, %cst_35 [1] : vector<1x128xf32> to vector<1xf32>
    %55 = vector.shape_cast %54 : vector<1xf32> to vector<1x1xf32>
    %56 = arith.addf %53, %55 : vector<1x1xf32>
    %c0_36 = arith.constant 0 : index
    %c0_37 = arith.constant 0 : index
    %57 = vector.load %arg13[%c0_36, %c0_37] : memref<1x1xf32, #tpu.memory_space<vmem>>, vector<1x1xf32>
    tpu.vector_store %arg13[%c0_36, %c0_37], %56 {strides = array<i32>} : memref<1x1xf32, #tpu.memory_space<vmem>>, vector<1x1xf32>,
    %c0_38 = arith.constant 0 : index
    %c0_39 = arith.constant 0 : index
    %58 = vector.load %arg12[%c0_38, %c0_39] : memref<1x1xf32, #tpu.memory_space<vmem>>, vector<1x1xf32>
    tpu.vector_store %arg12[%c0_38, %c0_39], %44 {strides = array<i32>} : memref<1x1xf32, #tpu.memory_space<vmem>>, vector<1x1xf32>,
    %59 = arith.index_cast %arg0 : i32 to index
    %c0_40 = arith.constant 0 : index
    %60 = vector.load %arg11[%59, %c0_40] : memref<2x128xf32, #tpu.memory_space<vmem>>, vector<1x128xf32>
    tpu.vector_store %arg11[%59, %c0_40], %40 {strides = array<i32>} : memref<2x128xf32, #tpu.memory_space<vmem>>, vector<1x128xf32>,
    %c1_i32 = arith.constant 1 : i32
    %61 = arith.cmpi eq, %arg0, %c1_i32 : i32
    %62 = arith.extui %61 : i1 to i32
    %c0_i32_41 = arith.constant 0 : i32
    %63 = arith.cmpi ne, %62, %c0_i32_41 : i32
    scf.if %63 {
      %c0_42 = arith.constant 0 : index
      %c0_43 = arith.constant 0 : index
      %64 = vector.load %arg11[%c0_42, %c0_43] : memref<2x128xf32, #tpu.memory_space<vmem>>, vector<2x128xf32>
      %c0_44 = arith.constant 0 : index
      %c0_45 = arith.constant 0 : index
      %65 = vector.load %arg12[%c0_44, %c0_45] : memref<1x1xf32, #tpu.memory_space<vmem>>, vector<1x1xf32>
      %c0_46 = arith.constant 0 : index
      %c0_47 = arith.constant 0 : index
      %66 = vector.load %arg13[%c0_46, %c0_47] : memref<1x1xf32, #tpu.memory_space<vmem>>, vector<1x1xf32>
      %67 = math.log %66 : vector<1x1xf32>
      %68 = arith.addf %65, %67 : vector<1x1xf32>
      %69 = vector.broadcast %68 : vector<1x1xf32> to vector<2x128xf32>
      %70 = arith.subf %64, %69 : vector<2x128xf32>
      %c0_48 = arith.constant 0 : index
      %c0_49 = arith.constant 0 : index
      %71 = vector.load %arg11[%c0_48, %c0_49] : memref<2x128xf32, #tpu.memory_space<vmem>>, vector<2x128xf32>
      tpu.vector_store %arg11[%c0_48, %c0_49], %70 {strides = array<i32>} : memref<2x128xf32, #tpu.memory_space<vmem>>, vector<2x128xf32>,
    } else {
    }
    return
  }
  func.func @transform_0(%arg0: i32) -> (i32, i32) {
    %c0_i32 = arith.constant 0 : i32
    %c0_i32_0 = arith.constant 0 : i32
    return %arg0, %c0_i32 : i32, i32
  }
  func.func @transform_1(%arg0: i32) -> (i32, i32) {
    %c0_i32 = arith.constant 0 : i32
    %c0_i32_0 = arith.constant 0 : i32
    return %c0_i32, %arg0 : i32, i32
  }
  func.func @transform_2(%arg0: i32) -> (i32, i32) {
    %c0_i32 = arith.constant 0 : i32
    %c0_i32_0 = arith.constant 0 : i32
    %c0_i32_1 = arith.constant 0 : i32
    return %c0_i32, %c0_i32_0 : i32, i32
  }
  func.func @transform_3(%arg0: i32) -> (i32, i32) {
    %c0_i32 = arith.constant 0 : i32
    %c0_i32_0 = arith.constant 0 : i32
    %c0_i32_1 = arith.constant 0 : i32
    return %c0_i32, %c0_i32_0 : i32, i32
  }
  func.func @transform_4(%arg0: i32) -> (i32, i32) {
    %c0_i32 = arith.constant 0 : i32
    %c0_i32_0 = arith.constant 0 : i32
    %c0_i32_1 = arith.constant 0 : i32
    return %c0_i32, %c0_i32_0 : i32, i32
  }
  func.func @transform_5(%arg0: i32) -> (i32, i32) {
    %c0_i32 = arith.constant 0 : i32
    %c0_i32_0 = arith.constant 0 : i32
    %c0_i32_1 = arith.constant 0 : i32
    return %c0_i32, %c0_i32_0 : i32, i32
  }
  func.func @transform_6(%arg0: i32) -> (i32, i32) {
    %c0_i32 = arith.constant 0 : i32
    %c0_i32_0 = arith.constant 0 : i32
    %c0_i32_1 = arith.constant 0 : i32
    return %c0_i32, %c0_i32_0 : i32, i32
  }
  func.func @transform_7(%arg0: i32) -> (i32, i32) {
    %c0_i32 = arith.constant 0 : i32
    %c0_i32_0 = arith.constant 0 : i32
    %c0_i32_1 = arith.constant 0 : i32
    return %c0_i32, %c0_i32_0 : i32, i32
  }
  func.func @transform_8(%arg0: i32) -> (i32, i32) {
    %c0_i32 = arith.constant 0 : i32
    %c0_i32_0 = arith.constant 0 : i32
    %c0_i32_1 = arith.constant 0 : i32
    return %c0_i32, %c0_i32_0 : i32, i32
  }
  func.func @transform_9(%arg0: i32) -> (i32, i32) {
    %c0_i32 = arith.constant 0 : i32
    %c0_i32_0 = arith.constant 0 : i32
    %c0_i32_1 = arith.constant 0 : i32
    return %c0_i32, %c0_i32_0 : i32, i32
  }
  func.func @transform_10(%arg0: i32) -> (i32, i32) {
    %c0_i32 = arith.constant 0 : i32
    %c0_i32_0 = arith.constant 0 : i32
    %c0_i32_1 = arith.constant 0 : i32
    return %c0_i32, %c0_i32_0 : i32, i32
  }
}

</mosaic_0001>

<llo_original>
// kernel: _policy_compute.1
$region0: #{_policy_compute.1}
  #allocation0 [shape = 'u32[]', space=smem, size = 0x4, offset = 0x4, fixed_abs, tag = 'smem constant byte address 0x4 - core index']
  #allocation1 [shape = 'u32[144,128]{1,0:T(1,128)}', space=vmem, size = 0x12000, scoped, tag = 'internal scratch']
  #allocation2 [shape = 'f32[1,1]{1,0:T(1,128)}', space=vmem, size = 0x200, scoped, tag = 'scratch operand']
  #allocation3 [shape = 'f32[1,1]{1,0:T(1,128)}', space=vmem, size = 0x200, scoped, tag = 'scratch operand']
  #allocation4 [shape = 'f32[1,1]{1,0:T(1,128)S(1)}', space=vmem, size = 0x200, scoped, tag = 'scoped memory for _policy_compute.1']
  %s0 = inlined_call_operand.vmem [shape: bf16[256,128], index: 0, kind: input, shape index: {}]
  %s1 = inlined_call_operand.vmem [shape: f32[1,256], index: 1, kind: input, shape index: {}]
  %s2 = inlined_call_operand.vmem [shape: bf16[128,128], index: 2, kind: input, shape index: {}]
  %s3 = inlined_call_operand.vmem [shape: f32[1,128], index: 3, kind: input, shape index: {}]
  %s4 = inlined_call_operand.vmem [shape: bf16[128,128], index: 4, kind: input, shape index: {}]
  %s5 = inlined_call_operand.vmem [shape: f32[1,128], index: 5, kind: input, shape index: {}]
  %s6 = inlined_call_operand.vmem [shape: bf16[128,128], index: 6, kind: input, shape index: {}]
  %s7 = inlined_call_operand.vmem [shape: f32[1,128], index: 7, kind: input, shape index: {}]
  %s8 = inlined_call_operand.vmem [shape: f32[128,1], index: 8, kind: input, shape index: {}]
  %s9 = inlined_call_operand.<no memory space> [shape: f32[1,1], index: 9, kind: input, shape index: {}]
  %s10 = inlined_call_operand.vmem [shape: f32[2,128], index: 10, kind: output, shape index: {}]
  %s11 = sld [smem:[#allocation0]]
  $region81: #{_policy_compute.1} parent=0
    _
  %s13 = ssub.s32 1, %s11
  %s14 = scalar_select 0, %s13, %s11
  %v15 = vstv %s9
  %16 = vst [vmem:[#allocation4] sm:$0x1] %v15
  loop: start=0, step=1, limit=4
  $region2: #{_policy_compute.1} parent=0 // loop_pre_header
    _
  $region3: #{_policy_compute.1} parent=0 // loop_header
    %s18 = sphi 0, %s22
    %p19 = scmp.ge.s32.totalorder %s18, 4
    %s28 = sphi 0, %s30
    %s31 = sphi 0, %s28
    %s32 = sphi 0, %s31
    %s48 = sphi 0, %s32
    %s54 = sphi 0, %s56
    %s57 = sphi 0, %s54
    %s58 = sphi 0, %s57
    %s74 = sphi 0, %s58
    %s78 = sphi 0, %s78
    %s80 = sphi 0, %s78
    %s81 = sphi 0, %s80
    %s95 = sphi 0, %s81
    %s99 = sphi 0, %s99
    %s101 = sphi 0, %s99
    %s102 = sphi 0, %s101
    %s116 = sphi 0, %s102
    %s120 = sphi 0, %s120
    %s122 = sphi 0, %s120
    %s123 = sphi 0, %s122
    %s137 = sphi 0, %s123
    %s141 = sphi 0, %s141
    %s143 = sphi 0, %s141
    %s144 = sphi 0, %s143
    %s158 = sphi 0, %s144
    %s162 = sphi 0, %s162
    %s164 = sphi 0, %s162
    %s165 = sphi 0, %s164
    %s179 = sphi 0, %s165
    %s183 = sphi 0, %s183
    %s185 = sphi 0, %s183
    %s186 = sphi 0, %s185
    %s200 = sphi 0, %s186
    %s204 = sphi 0, %s204
    %s206 = sphi 0, %s204
    %s207 = sphi 0, %s206
    %s221 = sphi 0, %s207
    %s225 = sphi 0, %s225
    %s227 = sphi 0, %s225
    %s228 = sphi 0, %s227
    %s242 = sphi 0, %s228
    %s246 = sphi 0, %s246
    %s248 = sphi 0, %s246
    %s249 = sphi 0, %s248
    %s263 = sphi 0, %s249
  $region4: #{_policy_compute.1} parent=0 // loop_header_branch
    %21 = sbr.rel (%p19) target = $region8
  $region5: #{_policy_compute.1} parent=0 // loop_body
    %s23 = ssub.s32 %s18, 1
    %s24 = ssub.s32 %s18, 2
    %s25 = sadd.s32 %s18, 1
    %s26 = ssub.s32 %s18, %s25
    %p27 = scmp.eq.s32.totalorder %s26, 0
    %s29 = sadd.s32 %s28, 1
    %s30 = scalar_select %p27, %s28, %s29
    %p33 = pneg %p27
    %p34 = scmp.eq.s32.totalorder %s18, 1
    %p35 = por %p33, %p34
    %p36 = scmp.ne.s32.totalorder %s28, %s31
    %p37 = scmp.eq.s32.totalorder %s18, 0
    %p38 = por %p36, %p37
    %p39 = scmp.ne.s32.totalorder %s28, %s31
    %p40 = scmp.eq.s32.totalorder %s23, 1
    %p41 = por %p39, %p40
    %p42 = scmp.ne.s32.totalorder %s31, %s32
    %p43 = scmp.eq.s32.totalorder %s23, 0
    %p44 = por %p42, %p43
    %p45 = scmp.ne.s32.totalorder %s31, %s32
    %p46 = scmp.eq.s32.totalorder %s24, 1
    %p47 = por %p45, %p46
    %p49 = scmp.ne.s32.totalorder %s32, %s48
    %p50 = scmp.eq.s32.totalorder %s24, 0
    %p51 = por %p49, %p50
    %s52 = ssub.s32 %s18, %s25
    %p53 = scmp.eq.s32.totalorder %s52, 0
    %s55 = sadd.s32 %s54, 1
    %s56 = scalar_select %p53, %s54, %s55
    %p59 = pneg %p53
    %p60 = scmp.eq.s32.totalorder %s18, 1
    %p61 = por %p59, %p60
    %p62 = scmp.ne.s32.totalorder %s54, %s57
    %p63 = scmp.eq.s32.totalorder %s18, 0
    %p64 = por %p62, %p63
    %p65 = scmp.ne.s32.totalorder %s54, %s57
    %p66 = scmp.eq.s32.totalorder %s23, 1
    %p67 = por %p65, %p66
    %p68 = scmp.ne.s32.totalorder %s57, %s58
    %p69 = scmp.eq.s32.totalorder %s23, 0
    %p70 = por %p68, %p69
    %p71 = scmp.ne.s32.totalorder %s57, %s58
    %p72 = scmp.eq.s32.totalorder %s24, 1
    %p73 = por %p71, %p72
    %p75 = scmp.ne.s32.totalorder %s58, %s74
    %p76 = scmp.eq.s32.totalorder %s24, 0
    %p77 = por %p75, %p76
    %s79 = sadd.s32 %s78, 1
    %p82 = scmp.eq.s32.totalorder %s18, 1
    %p83 = scmp.ne.s32.totalorder %s78, %s80
    %p84 = scmp.eq.s32.totalorder %s18, 0
    %p85 = por %p83, %p84
    %p86 = scmp.ne.s32.totalorder %s78, %s80
    %p87 = scmp.eq.s32.totalorder %s23, 1
    %p88 = por %p86, %p87
    %p89 = scmp.ne.s32.totalorder %s80, %s81
    %p90 = scmp.eq.s32.totalorder %s23, 0
    %p91 = por %p89, %p90
    %p92 = scmp.ne.s32.totalorder %s80, %s81
    %p93 = scmp.eq.s32.totalorder %s24, 1
    %p94 = por %p92, %p93
    %p96 = scmp.ne.s32.totalorder %s81, %s95
    %p97 = scmp.eq.s32.totalorder %s24, 0
    %p98 = por %p96, %p97
    %s100 = sadd.s32 %s99, 1
    %p103 = scmp.eq.s32.totalorder %s18, 1
    %p104 = scmp.ne.s32.totalorder %s99, %s101
    %p105 = scmp.eq.s32.totalorder %s18, 0
    %p106 = por %p104, %p105
    %p107 = scmp.ne.s32.totalorder %s99, %s101
    %p108 = scmp.eq.s32.totalorder %s23, 1
    %p109 = por %p107, %p108
    %p110 = scmp.ne.s32.totalorder %s101, %s102
    %p111 = scmp.eq.s32.totalorder %s23, 0
    %p112 = por %p110, %p111
    %p113 = scmp.ne.s32.totalorder %s101, %s102
    %p114 = scmp.eq.s32.totalorder %s24, 1
    %p115 = por %p113, %p114
    %p117 = scmp.ne.s32.totalorder %s102, %s116
    %p118 = scmp.eq.s32.totalorder %s24, 0
    %p119 = por %p117, %p118
    %s121 = sadd.s32 %s120, 1
    %p124 = scmp.eq.s32.totalorder %s18, 1
    %p125 = scmp.ne.s32.totalorder %s120, %s122
    %p126 = scmp.eq.s32.totalorder %s18, 0
    %p127 = por %p125, %p126
    %p128 = scmp.ne.s32.totalorder %s120, %s122
    %p129 = scmp.eq.s32.totalorder %s23, 1
    %p130 = por %p128, %p129
    %p131 = scmp.ne.s32.totalorder %s122, %s123
    %p132 = scmp.eq.s32.totalorder %s23, 0
    %p133 = por %p131, %p132
    %p134 = scmp.ne.s32.totalorder %s122, %s123
    %p135 = scmp.eq.s32.totalorder %s24, 1
    %p136 = por %p134, %p135
    %p138 = scmp.ne.s32.totalorder %s123, %s137
    %p139 = scmp.eq.s32.totalorder %s24, 0
    %p140 = por %p138, %p139
    %s142 = sadd.s32 %s141, 1
    %p145 = scmp.eq.s32.totalorder %s18, 1
    %p146 = scmp.ne.s32.totalorder %s141, %s143
    %p147 = scmp.eq.s32.totalorder %s18, 0
    %p148 = por %p146, %p147
    %p149 = scmp.ne.s32.totalorder %s141, %s143
    %p150 = scmp.eq.s32.totalorder %s23, 1
    %p151 = por %p149, %p150
    %p152 = scmp.ne.s32.totalorder %s143, %s144
    %p153 = scmp.eq.s32.totalorder %s23, 0
    %p154 = por %p152, %p153
    %p155 = scmp.ne.s32.totalorder %s143, %s144
    %p156 = scmp.eq.s32.totalorder %s24, 1
    %p157 = por %p155, %p156
    %p159 = scmp.ne.s32.totalorder %s144, %s158
    %p160 = scmp.eq.s32.totalorder %s24, 0
    %p161 = por %p159, %p160
    %s163 = sadd.s32 %s162, 1
    %p166 = scmp.eq.s32.totalorder %s18, 1
    %p167 = scmp.ne.s32.totalorder %s162, %s164
    %p168 = scmp.eq.s32.totalorder %s18, 0
    %p169 = por %p167, %p168
    %p170 = scmp.ne.s32.totalorder %s162, %s164
    %p171 = scmp.eq.s32.totalorder %s23, 1
    %p172 = por %p170, %p171
    %p173 = scmp.ne.s32.totalorder %s164, %s165
    %p174 = scmp.eq.s32.totalorder %s23, 0
    %p175 = por %p173, %p174
    %p176 = scmp.ne.s32.totalorder %s164, %s165
    %p177 = scmp.eq.s32.totalorder %s24, 1
    %p178 = por %p176, %p177
    %p180 = scmp.ne.s32.totalorder %s165, %s179
    %p181 = scmp.eq.s32.totalorder %s24, 0
    %p182 = por %p180, %p181
    %s184 = sadd.s32 %s183, 1
    %p187 = scmp.eq.s32.totalorder %s18, 1
    %p188 = scmp.ne.s32.totalorder %s183, %s185
    %p189 = scmp.eq.s32.totalorder %s18, 0
    %p190 = por %p188, %p189
    %p191 = scmp.ne.s32.totalorder %s183, %s185
    %p192 = scmp.eq.s32.totalorder %s23, 1
    %p193 = por %p191, %p192
    %p194 = scmp.ne.s32.totalorder %s185, %s186
    %p195 = scmp.eq.s32.totalorder %s23, 0
    %p196 = por %p194, %p195
    %p197 = scmp.ne.s32.totalorder %s185, %s186
    %p198 = scmp.eq.s32.totalorder %s24, 1
    %p199 = por %p197, %p198
    %p201 = scmp.ne.s32.totalorder %s186, %s200
    %p202 = scmp.eq.s32.totalorder %s24, 0
    %p203 = por %p201, %p202
    %s205 = sadd.s32 %s204, 1
    %p208 = scmp.eq.s32.totalorder %s18, 1
    %p209 = scmp.ne.s32.totalorder %s204, %s206
    %p210 = scmp.eq.s32.totalorder %s18, 0
    %p211 = por %p209, %p210
    %p212 = scmp.ne.s32.totalorder %s204, %s206
    %p213 = scmp.eq.s32.totalorder %s23, 1
    %p214 = por %p212, %p213
    %p215 = scmp.ne.s32.totalorder %s206, %s207
    %p216 = scmp.eq.s32.totalorder %s23, 0
    %p217 = por %p215, %p216
    %p218 = scmp.ne.s32.totalorder %s206, %s207
    %p219 = scmp.eq.s32.totalorder %s24, 1
    %p220 = por %p218, %p219
    %p222 = scmp.ne.s32.totalorder %s207, %s221
    %p223 = scmp.eq.s32.totalorder %s24, 0
    %p224 = por %p222, %p223
    %s226 = sadd.s32 %s225, 1
    %p229 = scmp.eq.s32.totalorder %s18, 1
    %p230 = scmp.ne.s32.totalorder %s225, %s227
    %p231 = scmp.eq.s32.totalorder %s18, 0
    %p232 = por %p230, %p231
    %p233 = scmp.ne.s32.totalorder %s225, %s227
    %p234 = scmp.eq.s32.totalorder %s23, 1
    %p235 = por %p233, %p234
    %p236 = scmp.ne.s32.totalorder %s227, %s228
    %p237 = scmp.eq.s32.totalorder %s23, 0
    %p238 = por %p236, %p237
    %p239 = scmp.ne.s32.totalorder %s227, %s228
    %p240 = scmp.eq.s32.totalorder %s24, 1
    %p241 = por %p239, %p240
    %p243 = scmp.ne.s32.totalorder %s228, %s242
    %p244 = scmp.eq.s32.totalorder %s24, 0
    %p245 = por %p243, %p244
    %s247 = sadd.s32 %s246, 1
    %p250 = scmp.eq.s32.totalorder %s18, 1
    %p251 = scmp.ne.s32.totalorder %s246, %s248
    %p252 = scmp.eq.s32.totalorder %s18, 0
    %p253 = por %p251, %p252
    %p254 = scmp.ne.s32.totalorder %s246, %s248
    %p255 = scmp.eq.s32.totalorder %s23, 1
    %p256 = por %p254, %p255
    %p257 = scmp.ne.s32.totalorder %s248, %s249
    %p258 = scmp.eq.s32.totalorder %s23, 0
    %p259 = por %p257, %p258
    %p260 = scmp.ne.s32.totalorder %s248, %s249
    %p261 = scmp.eq.s32.totalorder %s24, 1
    %p262 = por %p260, %p261
    %p264 = scmp.ne.s32.totalorder %s249, %s263
    %p265 = scmp.eq.s32.totalorder %s24, 0
    %p266 = por %p264, %p265
    %p267 = scmp.le.s32.totalorder 1, %s18
    %p268 = scmp.lt.s32.totalorder %s18, 3
    %p269 = pnand %p267, %p268
    %p270 = pneg %p269
    // Predicated region
    $region9: #{_policy_compute.1} parent=5 // pred_check
      _
    $region10: #{_policy_compute.1} parent=5 // pred_check_branch
      %272 = sbr.rel (%p269) target = $region12
    $region11: #{_policy_compute.1} parent=5 // pred_region
      %s273 = ssub.s32 %s18, 1
      // Predicated region
      $region13: #{_policy_compute.1} parent=11 // pred_check
        %p274 = pneg %p91
      $region14: #{_policy_compute.1} parent=11 // pred_check_branch
        %276 = sbr.rel (%p274) target = $region16
      $region15: #{_policy_compute.1} parent=11 // pred_region
        _
      $region16: #{_policy_compute.1} parent=11 // pred_fallthru
        _
      // Predicated region
      $region17: #{_policy_compute.1} parent=11 // pred_check
        %p277 = pneg %p112
      $region18: #{_policy_compute.1} parent=11 // pred_check_branch
        %279 = sbr.rel (%p277) target = $region20
      $region19: #{_policy_compute.1} parent=11 // pred_region
        _
      $region20: #{_policy_compute.1} parent=11 // pred_fallthru
        _
      // Predicated region
      $region21: #{_policy_compute.1} parent=11 // pred_check
        %p280 = pneg %p133
      $region22: #{_policy_compute.1} parent=11 // pred_check_branch
        %282 = sbr.rel (%p280) target = $region24
      $region23: #{_policy_compute.1} parent=11 // pred_region
        _
      $region24: #{_policy_compute.1} parent=11 // pred_fallthru
        _
      // Predicated region
      $region25: #{_policy_compute.1} parent=11 // pred_check
        %p283 = pneg %p154
      $region26: #{_policy_compute.1} parent=11 // pred_check_branch
        %285 = sbr.rel (%p283) target = $region28
      $region27: #{_policy_compute.1} parent=11 // pred_region
        _
      $region28: #{_policy_compute.1} parent=11 // pred_fallthru
        _
      // Predicated region
      $region29: #{_policy_compute.1} parent=11 // pred_check
        %p286 = pneg %p175
      $region30: #{_policy_compute.1} parent=11 // pred_check_branch
        %288 = sbr.rel (%p286) target = $region32
      $region31: #{_policy_compute.1} parent=11 // pred_region
        _
      $region32: #{_policy_compute.1} parent=11 // pred_fallthru
        _
      // Predicated region
      $region33: #{_policy_compute.1} parent=11 // pred_check
        %p289 = pneg %p196
      $region34: #{_policy_compute.1} parent=11 // pred_check_branch
        %291 = sbr.rel (%p289) target = $region36
      $region35: #{_policy_compute.1} parent=11 // pred_region
        _
      $region36: #{_policy_compute.1} parent=11 // pred_fallthru
        _
      // Predicated region
      $region37: #{_policy_compute.1} parent=11 // pred_check
        %p292 = pneg %p217
      $region38: #{_policy_compute.1} parent=11 // pred_check_branch
        %294 = sbr.rel (%p292) target = $region40
      $region39: #{_policy_compute.1} parent=11 // pred_region
        _
      $region40: #{_policy_compute.1} parent=11 // pred_fallthru
        _
      // Predicated region
      $region41: #{_policy_compute.1} parent=11 // pred_check
        %p295 = pneg %p238
      $region42: #{_policy_compute.1} parent=11 // pred_check_branch
        %297 = sbr.rel (%p295) target = $region44
      $region43: #{_policy_compute.1} parent=11 // pred_region
        _
      $region44: #{_policy_compute.1} parent=11 // pred_fallthru
        _
    $region12: #{_policy_compute.1} parent=5 // pred_fallthru
      _
    %p298 = scmp.lt.s32.totalorder %s18, 2
    // Predicated region
    $region45: #{_policy_compute.1} parent=5 // pred_check
      %p299 = pneg %p298
    $region46: #{_policy_compute.1} parent=5 // pred_check_branch
      %301 = sbr.rel (%p299) target = $region48
    $region47: #{_policy_compute.1} parent=5 // pred_region
      // Predicated region
      $region49: #{_policy_compute.1} parent=47 // pred_check
        %p302 = pneg %p38
      $region50: #{_policy_compute.1} parent=47 // pred_check_branch
        %304 = sbr.rel (%p302) target = $region52
      $region51: #{_policy_compute.1} parent=47 // pred_region
        %s305 = smul.u32 16, %s18
        %p306 = scmp.lt.s32.totalorder %s305, 31
        %s307 = scalar_select %p306, %s305, 31
        %s308 = smul.addr %s307, 4
        %s309 = scalar_lea.vmem %s0, %s308
        %s310 = smul.u32 16, %s18
      $region52: #{_policy_compute.1} parent=47 // pred_fallthru
        _
      // Predicated region
      $region53: #{_policy_compute.1} parent=47 // pred_check
        %p311 = pneg %p64
      $region54: #{_policy_compute.1} parent=47 // pred_check_branch
        %313 = sbr.rel (%p311) target = $region56
      $region55: #{_policy_compute.1} parent=47 // pred_region
        %p314 = scmp.lt.s32.totalorder %s18, 1
        %s315 = scalar_select %p314, %s18, 1
        %s316 = scalar_lea.vmem %s1, %s315
      $region56: #{_policy_compute.1} parent=47 // pred_fallthru
        _
    $region48: #{_policy_compute.1} parent=5 // pred_fallthru
      _
    %p317 = scmp.le.s32.totalorder 1, %s18
    %p318 = scmp.lt.s32.totalorder %s18, 3
    %p319 = pnand %p317, %p318
    %p320 = pneg %p319
    // Predicated region
    $region57: #{_policy_compute.1} parent=5 // pred_check
      _
    $region58: #{_policy_compute.1} parent=5 // pred_check_branch
      %322 = sbr.rel (%p319) target = $region60
    $region59: #{_policy_compute.1} parent=5 // pred_region
      %s323 = ssub.s32 %s18, 1
      %s324 = smul.u32 16, %s23
      %p325 = scmp.lt.s32.totalorder %s324, 31
      %s326 = scalar_select %p325, %s324, 31
      %s327 = smul.addr %s326, 4
      %s328 = scalar_lea.vmem %s0, %s327
      %p329 = pneg %p44
      %p330 = pneg %p41
      %p331 = scmp.lt.s32.totalorder %s23, 1
      %s332 = scalar_select %p331, %s23, 1
      %s333 = scalar_lea.vmem %s1, %s332
      %p334 = pneg %p70
      %p335 = pneg %p67
      %p336 = pneg %p91
      %p337 = pneg %p88
      %p338 = pneg %p112
      %p339 = pneg %p109
      %p340 = pneg %p133
      %p341 = pneg %p130
      %p342 = pneg %p154
      %p343 = pneg %p151
      %p344 = pneg %p175
      %p345 = pneg %p172
      %p346 = pneg %p196
      %p347 = pneg %p193
      %p348 = pneg %p217
      %p349 = pneg %p214
      %p350 = pneg %p238
      %p351 = pneg %p235
      %p352 = pneg %p259
      %p353 = pneg %p256
      %s354 = smul.u32 16, %s23
      %p355 = scmp.lt.s32.totalorder %s354, 31
      %s356 = scalar_select %p355, %s354, 31
      %s357 = smul.addr %s356, 4
      %s358 = scalar_lea.vmem %s0, %s357
      %s359 = smul.u32 16, %s23
      %p360 = scmp.lt.s32.totalorder %s23, 1
      %s361 = scalar_select %p360, %s23, 1
      %s362 = scalar_lea.vmem %s1, %s361
      %p364 = scmp.eq.s32.totalorder %s23, 0
      // Predicated region
      $region61: #{_policy_compute.1} parent=59 // pred_check
        %p365 = pneg %p364
      $region62: #{_policy_compute.1} parent=59 // pred_check_branch
        %367 = sbr.rel (%p365) target = $region64
      $region63: #{_policy_compute.1} parent=59 // pred_region
        %vm368 = vcmask 0
        %369 = vst.msk [vmem:[#allocation2] sm:$0x1] %vm368, -1e+30
        %370 = vst.msk [vmem:[#allocation3] sm:$0x1] %vm368, 0.0
      $region64: #{_policy_compute.1} parent=59 // pred_fallthru
        _
      %v371 = vld [vmem:[%s358] sm:$0xf]
      %v372 = vld [vmem:[%s358 + $0x4] sm:$0xf]
      %v373 = vld [vmem:[%s358 + $0x8] sm:$0xf]
      %v374 = vld [vmem:[%s358 + $0xc] sm:$0xf]
      %v375 = vld [vmem:[%s358 + $0x10] sm:$0xf]
      %v376 = vld [vmem:[%s358 + $0x14] sm:$0xf]
      %v377 = vld [vmem:[%s358 + $0x18] sm:$0xf]
      %v378 = vld [vmem:[%s358 + $0x1c] sm:$0xf]
      %v379 = vld [vmem:[%s358 + $0x20] sm:$0xf]
      %v380 = vld [vmem:[%s358 + $0x24] sm:$0xf]
      %v381 = vld [vmem:[%s358 + $0x28] sm:$0xf]
      %v382 = vld [vmem:[%s358 + $0x2c] sm:$0xf]
      %v383 = vld [vmem:[%s358 + $0x30] sm:$0xf]
      %v384 = vld [vmem:[%s358 + $0x34] sm:$0xf]
      %v385 = vld [vmem:[%s358 + $0x38] sm:$0xf]
      %v386 = vld [vmem:[%s358 + $0x3c] sm:$0xf]
      %v387 = vld [vmem:[%s2] sm:$0xf]
      %v388 = vld [vmem:[%s2 + $0x4] sm:$0xf]
      %v389 = vld [vmem:[%s2 + $0x8] sm:$0xf]
      %v390 = vld [vmem:[%s2 + $0xc] sm:$0xf]
      %v391 = vld [vmem:[%s2 + $0x10] sm:$0xf]
      %v392 = vld [vmem:[%s2 + $0x14] sm:$0xf]
      %v393 = vld [vmem:[%s2 + $0x18] sm:$0xf]
      %v394 = vld [vmem:[%s2 + $0x1c] sm:$0xf]
      %v395 = vld [vmem:[%s2 + $0x20] sm:$0xf]
      %v396 = vld [vmem:[%s2 + $0x24] sm:$0xf]
      %v397 = vld [vmem:[%s2 + $0x28] sm:$0xf]
      %v398 = vld [vmem:[%s2 + $0x2c] sm:$0xf]
      %v399 = vld [vmem:[%s2 + $0x30] sm:$0xf]
      %v400 = vld [vmem:[%s2 + $0x34] sm:$0xf]
      %v401 = vld [vmem:[%s2 + $0x38] sm:$0xf]
      %v402 = vld [vmem:[%s2 + $0x3c] sm:$0xf]
      %v403 = vld [vmem:[%s3] sm:$0x1]
      %v405 = vlaneseq
      %v406 = vshrl.u32 %v405, 7
      %v407 = vsub.s32 0, %v406
      %v408 = vrot.slane %v403, %v407
      %v426 = vunpack.c.l.b16 %v371
      %v427 = vunpack.c.l.b16 %v372
      %v428 = vunpack.c.l.b16 %v373
      %v429 = vunpack.c.l.b16 %v374
      %v430 = vunpack.c.l.b16 %v375
      %v431 = vunpack.c.l.b16 %v376
      %v432 = vunpack.c.l.b16 %v377
      %v433 = vunpack.c.l.b16 %v378
      %v434 = vunpack.c.l.b16 %v379
      %v435 = vunpack.c.l.b16 %v380
      %v436 = vunpack.c.l.b16 %v381
      %v437 = vunpack.c.l.b16 %v382
      %v438 = vunpack.c.l.b16 %v383
      %v439 = vunpack.c.l.b16 %v384
      %v440 = vunpack.c.l.b16 %v385
      %v441 = vunpack.c.l.b16 %v386
      %v442 = vpack.c.b16 %v427, %v426
      %v443 = vpack.c.b16 %v429, %v428
      %v444 = vpack.c.b16 %v431, %v430
      %v445 = vpack.c.b16 %v433, %v432
      %v446 = vpack.c.b16 %v435, %v434
      %v447 = vpack.c.b16 %v437, %v436
      %v448 = vpack.c.b16 %v439, %v438
      %v449 = vpack.c.b16 %v441, %v440
      %v474 = vunpack.c.l.b16 %v387
      %v475 = vunpack.c.l.b16 %v388
      %v476 = vunpack.c.l.b16 %v389
      %v477 = vunpack.c.l.b16 %v390
      %v478 = vunpack.c.l.b16 %v391
      %v479 = vunpack.c.l.b16 %v392
      %v480 = vunpack.c.l.b16 %v393
      %v481 = vunpack.c.l.b16 %v394
      %v482 = vunpack.c.l.b16 %v395
      %v483 = vunpack.c.l.b16 %v396
      %v484 = vunpack.c.l.b16 %v397
      %v485 = vunpack.c.l.b16 %v398
      %v486 = vunpack.c.l.b16 %v399
      %v487 = vunpack.c.l.b16 %v400
      %v488 = vunpack.c.l.b16 %v401
      %v489 = vunpack.c.l.b16 %v402
      %v490 = vpack.c.b16 %v475, %v474
      %v491 = vpack.c.b16 %v477, %v476
      %v492 = vpack.c.b16 %v479, %v478
      %v493 = vpack.c.b16 %v481, %v480
      %v494 = vpack.c.b16 %v483, %v482
      %v495 = vpack.c.b16 %v485, %v484
      %v496 = vpack.c.b16 %v487, %v486
      %v497 = vpack.c.b16 %v489, %v488
      %506 = vmatprep.subr.bf16.mxu0 0
      %507 = vmatpush1.bf16.msra.mxu0 %v490
      %508 = vmatprep.subr.bf16.mxu0 0
      %509 = vmatpush1.bf16.msra.mxu0 %v491
      %510 = vmatprep.subr.bf16.mxu0 0
      %511 = vmatpush1.bf16.msra.mxu0 %v492
      %512 = vmatprep.subr.bf16.mxu0 0
      %513 = vmatpush1.bf16.msra.mxu0 %v493
      %514 = vmatprep.subr.bf16.mxu0 0
      %515 = vmatpush1.bf16.msra.mxu0 %v494
      %516 = vmatprep.subr.bf16.mxu0 0
      %517 = vmatpush1.bf16.msra.mxu0 %v495
      %518 = vmatprep.subr.bf16.mxu0 0
      %519 = vmatpush1.bf16.msra.mxu0 %v496
      %520 = vmatprep.subr.bf16.mxu0 0
      %521 = vmatpush1.bf16.msra.mxu0 %v497
      %522 = vmatprep.subr.bf16.mxu0 0
      %523 = vmatpush1.bf16.msra.mxu0 0
      %524 = vmatprep.subr.bf16.mxu0 0
      %525 = vmatpush1.bf16.msra.mxu0 0
      %526 = vmatprep.subr.bf16.mxu0 0
      %527 = vmatpush1.bf16.msra.mxu0 0
      %528 = vmatprep.subr.bf16.mxu0 0
      %529 = vmatpush1.bf16.msra.mxu0 0
      %530 = vmatprep.subr.bf16.mxu0 0
      %531 = vmatpush1.bf16.msra.mxu0 0
      %532 = vmatprep.subr.bf16.mxu0 0
      %533 = vmatpush1.bf16.msra.mxu0 0
      %534 = vmatprep.subr.bf16.mxu0 0
      %535 = vmatpush1.bf16.msra.mxu0 0
      %536 = vmatprep.subr.bf16.mxu0 0
      %537 = vmatpush1.bf16.msra.mxu0 0
      %538 = vmatprep.mubr.bf16.mxu0 0
      %539 = vmatmul.mubr.bf16.gmra.mrb[0].mxu0 %v442
      %v540 = vpop.f32.mrb[0].mxu0
      %v541 = vadd.f32 %v408, %v540
      %v542 = vpop.f32.mrb[0].mxu0
      %v543 = vpop.f32.mrb[0].mxu0
      %v544 = vadd.f32 %v408, %v543
      %v545 = vpop.f32.mrb[0].mxu0
      %546 = vmatprep.mubr.bf16.mxu0 0
      %547 = vmatmul.mubr.bf16.gmra.mrb[0].mxu0 %v443
      %v548 = vpop.f32.mrb[0].mxu0
      %v549 = vadd.f32 %v408, %v548
      %v550 = vpop.f32.mrb[0].mxu0
      %v551 = vpop.f32.mrb[0].mxu0
      %v552 = vadd.f32 %v408, %v551
      %v553 = vpop.f32.mrb[0].mxu0
      %554 = vmatprep.mubr.bf16.mxu0 0
      %555 = vmatmul.mubr.bf16.gmra.mrb[0].mxu0 %v444
      %v556 = vpop.f32.mrb[0].mxu0
      %v557 = vadd.f32 %v408, %v556
      %v558 = vpop.f32.mrb[0].mxu0
      %v559 = vpop.f32.mrb[0].mxu0
      %v560 = vadd.f32 %v408, %v559
      %v561 = vpop.f32.mrb[0].mxu0
      %562 = vmatprep.mubr.bf16.mxu0 0
      %563 = vmatmul.mubr.bf16.gmra.mrb[0].mxu0 %v445
      %v564 = vpop.f32.mrb[0].mxu0
      %v565 = vadd.f32 %v408, %v564
      %v566 = vpop.f32.mrb[0].mxu0
      %v567 = vpop.f32.mrb[0].mxu0
      %v568 = vadd.f32 %v408, %v567
      %v569 = vpop.f32.mrb[0].mxu0
      %570 = vmatprep.mubr.bf16.mxu0 0
      %571 = vmatmul.mubr.bf16.gmra.mrb[0].mxu0 %v446
      %v572 = vpop.f32.mrb[0].mxu0
      %v573 = vadd.f32 %v408, %v572
      %v574 = vpop.f32.mrb[0].mxu0
      %v575 = vpop.f32.mrb[0].mxu0
      %v576 = vadd.f32 %v408, %v575
      %v577 = vpop.f32.mrb[0].mxu0
      %578 = vmatprep.mubr.bf16.mxu0 0
      %579 = vmatmul.mubr.bf16.gmra.mrb[0].mxu0 %v447
      %v580 = vpop.f32.mrb[0].mxu0
      %v581 = vadd.f32 %v408, %v580
      %v582 = vpop.f32.mrb[0].mxu0
      %v583 = vpop.f32.mrb[0].mxu0
      %v584 = vadd.f32 %v408, %v583
      %v585 = vpop.f32.mrb[0].mxu0
      %586 = vmatprep.mubr.bf16.mxu0 0
      %587 = vmatmul.mubr.bf16.gmra.mrb[0].mxu0 %v448
      %v588 = vpop.f32.mrb[0].mxu0
      %v589 = vadd.f32 %v408, %v588
      %v590 = vpop.f32.mrb[0].mxu0
      %v591 = vpop.f32.mrb[0].mxu0
      %v592 = vadd.f32 %v408, %v591
      %v593 = vpop.f32.mrb[0].mxu0
      %594 = vmatprep.mubr.bf16.mxu0 0
      %595 = vmatmul.mubr.bf16.gmra.mrb[0].mxu0 %v449
      %v596 = vpop.f32.mrb[0].mxu0
      %v597 = vadd.f32 %v408, %v596
      %v598 = vpop.f32.mrb[0].mxu0
      %v599 = vpop.f32.mrb[0].mxu0
      %v600 = vadd.f32 %v408, %v599
      %v601 = vpop.f32.mrb[0].mxu0
      %602 = vdwg.mxu0
      %v603 = vmax.f32 %v541, 0.0
      %v604 = vmax.f32 %v544, 0.0
      %v605 = vmax.f32 %v549, 0.0
      %v606 = vmax.f32 %v552, 0.0
      %v607 = vmax.f32 %v557, 0.0
      %v608 = vmax.f32 %v560, 0.0
      %v609 = vmax.f32 %v565, 0.0
      %v610 = vmax.f32 %v568, 0.0
      %v611 = vmax.f32 %v573, 0.0
      %v612 = vmax.f32 %v576, 0.0
      %v613 = vmax.f32 %v581, 0.0
      %v614 = vmax.f32 %v584, 0.0
      %v615 = vmax.f32 %v589, 0.0
      %v616 = vmax.f32 %v592, 0.0
      %v617 = vmax.f32 %v597, 0.0
      %v618 = vmax.f32 %v600, 0.0
      %v619 = vpack.c.bf16 %v604, %v603
      %v620 = vpack.c.bf16 %v606, %v605
      %v621 = vpack.c.bf16 %v608, %v607
      %v622 = vpack.c.bf16 %v610, %v609
      %v623 = vpack.c.bf16 %v612, %v611
      %v624 = vpack.c.bf16 %v614, %v613
      %v625 = vpack.c.bf16 %v616, %v615
      %v626 = vpack.c.bf16 %v618, %v617
      %v627 = vld [vmem:[%s4] sm:$0xf]
      %v628 = vld [vmem:[%s4 + $0x4] sm:$0xf]
      %v629 = vld [vmem:[%s4 + $0x8] sm:$0xf]
      %v630 = vld [vmem:[%s4 + $0xc] sm:$0xf]
      %v631 = vld [vmem:[%s4 + $0x10] sm:$0xf]
      %v632 = vld [vmem:[%s4 + $0x14] sm:$0xf]
      %v633 = vld [vmem:[%s4 + $0x18] sm:$0xf]
      %v634 = vld [vmem:[%s4 + $0x1c] sm:$0xf]
      %v635 = vld [vmem:[%s4 + $0x20] sm:$0xf]
      %v636 = vld [vmem:[%s4 + $0x24] sm:$0xf]
      %v637 = vld [vmem:[%s4 + $0x28] sm:$0xf]
      %v638 = vld [vmem:[%s4 + $0x2c] sm:$0xf]
      %v639 = vld [vmem:[%s4 + $0x30] sm:$0xf]
      %v640 = vld [vmem:[%s4 + $0x34] sm:$0xf]
      %v641 = vld [vmem:[%s4 + $0x38] sm:$0xf]
      %v642 = vld [vmem:[%s4 + $0x3c] sm:$0xf]
      %v643 = vld [vmem:[%s5] sm:$0x1]
      %v645 = vlaneseq
      %v646 = vshrl.u32 %v645, 7
      %v647 = vsub.s32 0, %v646
      %v648 = vrot.slane %v643, %v647
      %v666 = vunpack.c.l.b16 %v627
      %v667 = vunpack.c.l.b16 %v628
      %v668 = vunpack.c.l.b16 %v629
      %v669 = vunpack.c.l.b16 %v630
      %v670 = vunpack.c.l.b16 %v631
      %v671 = vunpack.c.l.b16 %v632
      %v672 = vunpack.c.l.b16 %v633
      %v673 = vunpack.c.l.b16 %v634
      %v674 = vunpack.c.l.b16 %v635
      %v675 = vunpack.c.l.b16 %v636
      %v676 = vunpack.c.l.b16 %v637
      %v677 = vunpack.c.l.b16 %v638
      %v678 = vunpack.c.l.b16 %v639
      %v679 = vunpack.c.l.b16 %v640
      %v680 = vunpack.c.l.b16 %v641
      %v681 = vunpack.c.l.b16 %v642
      %v682 = vpack.c.b16 %v667, %v666
      %v683 = vpack.c.b16 %v669, %v668
      %v684 = vpack.c.b16 %v671, %v670
      %v685 = vpack.c.b16 %v673, %v672
      %v686 = vpack.c.b16 %v675, %v674
      %v687 = vpack.c.b16 %v677, %v676
      %v688 = vpack.c.b16 %v679, %v678
      %v689 = vpack.c.b16 %v681, %v680
      %698 = vmatprep.subr.bf16.mxu0 0
      %699 = vmatpush1.bf16.msra.mxu0 %v682
      %700 = vmatprep.subr.bf16.mxu0 0
      %701 = vmatpush1.bf16.msra.mxu0 %v683
      %702 = vmatprep.subr.bf16.mxu0 0
      %703 = vmatpush1.bf16.msra.mxu0 %v684
      %704 = vmatprep.subr.bf16.mxu0 0
      %705 = vmatpush1.bf16.msra.mxu0 %v685
      %706 = vmatprep.subr.bf16.mxu0 0
      %707 = vmatpush1.bf16.msra.mxu0 %v686
      %708 = vmatprep.subr.bf16.mxu0 0
      %709 = vmatpush1.bf16.msra.mxu0 %v687
      %710 = vmatprep.subr.bf16.mxu0 0
      %711 = vmatpush1.bf16.msra.mxu0 %v688
      %712 = vmatprep.subr.bf16.mxu0 0
      %713 = vmatpush1.bf16.msra.mxu0 %v689
      %714 = vmatprep.subr.bf16.mxu0 0
      %715 = vmatpush1.bf16.msra.mxu0 0
      %716 = vmatprep.subr.bf16.mxu0 0
      %717 = vmatpush1.bf16.msra.mxu0 0
      %718 = vmatprep.subr.bf16.mxu0 0
      %719 = vmatpush1.bf16.msra.mxu0 0
      %720 = vmatprep.subr.bf16.mxu0 0
      %721 = vmatpush1.bf16.msra.mxu0 0
      %722 = vmatprep.subr.bf16.mxu0 0
      %723 = vmatpush1.bf16.msra.mxu0 0
      %724 = vmatprep.subr.bf16.mxu0 0
      %725 = vmatpush1.bf16.msra.mxu0 0
      %726 = vmatprep.subr.bf16.mxu0 0
      %727 = vmatpush1.bf16.msra.mxu0 0
      %728 = vmatprep.subr.bf16.mxu0 0
      %729 = vmatpush1.bf16.msra.mxu0 0
      %730 = vmatprep.mubr.bf16.mxu0 0
      %731 = vmatmul.mubr.bf16.gmra.mrb[0].mxu0 %v619
      %v732 = vpop.f32.mrb[0].mxu0
      %v733 = vadd.f32 %v648, %v732
      %v734 = vpop.f32.mrb[0].mxu0
      %v735 = vpop.f32.mrb[0].mxu0
      %v736 = vadd.f32 %v648, %v735
      %v737 = vpop.f32.mrb[0].mxu0
      %738 = vmatprep.mubr.bf16.mxu0 0
      %739 = vmatmul.mubr.bf16.gmra.mrb[0].mxu0 %v620
      %v740 = vpop.f32.mrb[0].mxu0
      %v741 = vadd.f32 %v648, %v740
      %v742 = vpop.f32.mrb[0].mxu0
      %v743 = vpop.f32.mrb[0].mxu0
      %v744 = vadd.f32 %v648, %v743
      %v745 = vpop.f32.mrb[0].mxu0
      %746 = vmatprep.mubr.bf16.mxu0 0
      %747 = vmatmul.mubr.bf16.gmra.mrb[0].mxu0 %v621
      %v748 = vpop.f32.mrb[0].mxu0
      %v749 = vadd.f32 %v648, %v748
      %v750 = vpop.f32.mrb[0].mxu0
      %v751 = vpop.f32.mrb[0].mxu0
      %v752 = vadd.f32 %v648, %v751
      %v753 = vpop.f32.mrb[0].mxu0
      %754 = vmatprep.mubr.bf16.mxu0 0
      %755 = vmatmul.mubr.bf16.gmra.mrb[0].mxu0 %v622
      %v756 = vpop.f32.mrb[0].mxu0
      %v757 = vadd.f32 %v648, %v756
      %v758 = vpop.f32.mrb[0].mxu0
      %v759 = vpop.f32.mrb[0].mxu0
      %v760 = vadd.f32 %v648, %v759
      %v761 = vpop.f32.mrb[0].mxu0
      %762 = vmatprep.mubr.bf16.mxu0 0
      %763 = vmatmul.mubr.bf16.gmra.mrb[0].mxu0 %v623
      %v764 = vpop.f32.mrb[0].mxu0
      %v765 = vadd.f32 %v648, %v764
      %v766 = vpop.f32.mrb[0].mxu0
      %v767 = vpop.f32.mrb[0].mxu0
      %v768 = vadd.f32 %v648, %v767
      %v769 = vpop.f32.mrb[0].mxu0
      %770 = vmatprep.mubr.bf16.mxu0 0
      %771 = vmatmul.mubr.bf16.gmra.mrb[0].mxu0 %v624
      %v772 = vpop.f32.mrb[0].mxu0
      %v773 = vadd.f32 %v648, %v772
      %v774 = vpop.f32.mrb[0].mxu0
      %v775 = vpop.f32.mrb[0].mxu0
      %v776 = vadd.f32 %v648, %v775
      %v777 = vpop.f32.mrb[0].mxu0
      %778 = vmatprep.mubr.bf16.mxu0 0
      %779 = vmatmul.mubr.bf16.gmra.mrb[0].mxu0 %v625
      %v780 = vpop.f32.mrb[0].mxu0
      %v781 = vadd.f32 %v648, %v780
      %v782 = vpop.f32.mrb[0].mxu0
      %v783 = vpop.f32.mrb[0].mxu0
      %v784 = vadd.f32 %v648, %v783
      %v785 = vpop.f32.mrb[0].mxu0
      %786 = vmatprep.mubr.bf16.mxu0 0
      %787 = vmatmul.mubr.bf16.gmra.mrb[0].mxu0 %v626
      %v788 = vpop.f32.mrb[0].mxu0
      %v789 = vadd.f32 %v648, %v788
      %v790 = vpop.f32.mrb[0].mxu0
      %v791 = vpop.f32.mrb[0].mxu0
      %v792 = vadd.f32 %v648, %v791
      %v793 = vpop.f32.mrb[0].mxu0
      %794 = vdwg.mxu0
      %v795 = vmax.f32 %v733, 0.0
      %v796 = vmax.f32 %v736, 0.0
      %v797 = vmax.f32 %v741, 0.0
      %v798 = vmax.f32 %v744, 0.0
      %v799 = vmax.f32 %v749, 0.0
      %v800 = vmax.f32 %v752, 0.0
      %v801 = vmax.f32 %v757, 0.0
      %v802 = vmax.f32 %v760, 0.0
      %v803 = vmax.f32 %v765, 0.0
      %v804 = vmax.f32 %v768, 0.0
      %v805 = vmax.f32 %v773, 0.0
      %v806 = vmax.f32 %v776, 0.0
      %v807 = vmax.f32 %v781, 0.0
      %v808 = vmax.f32 %v784, 0.0
      %v809 = vmax.f32 %v789, 0.0
      %v810 = vmax.f32 %v792, 0.0
      %v811 = vpack.c.bf16 %v796, %v795
      %v812 = vpack.c.bf16 %v798, %v797
      %v813 = vpack.c.bf16 %v800, %v799
      %v814 = vpack.c.bf16 %v802, %v801
      %v815 = vpack.c.bf16 %v804, %v803
      %v816 = vpack.c.bf16 %v806, %v805
      %v817 = vpack.c.bf16 %v808, %v807
      %v818 = vpack.c.bf16 %v810, %v809
      %v819 = vld [vmem:[%s6] sm:$0xf]
      %v820 = vld [vmem:[%s6 + $0x4] sm:$0xf]
      %v821 = vld [vmem:[%s6 + $0x8] sm:$0xf]
      %v822 = vld [vmem:[%s6 + $0xc] sm:$0xf]
      %v823 = vld [vmem:[%s6 + $0x10] sm:$0xf]
      %v824 = vld [vmem:[%s6 + $0x14] sm:$0xf]
      %v825 = vld [vmem:[%s6 + $0x18] sm:$0xf]
      %v826 = vld [vmem:[%s6 + $0x1c] sm:$0xf]
      %v827 = vld [vmem:[%s6 + $0x20] sm:$0xf]
      %v828 = vld [vmem:[%s6 + $0x24] sm:$0xf]
      %v829 = vld [vmem:[%s6 + $0x28] sm:$0xf]
      %v830 = vld [vmem:[%s6 + $0x2c] sm:$0xf]
      %v831 = vld [vmem:[%s6 + $0x30] sm:$0xf]
      %v832 = vld [vmem:[%s6 + $0x34] sm:$0xf]
      %v833 = vld [vmem:[%s6 + $0x38] sm:$0xf]
      %v834 = vld [vmem:[%s6 + $0x3c] sm:$0xf]
      %v835 = vld [vmem:[%s7] sm:$0x1]
      %v837 = vlaneseq
      %v838 = vshrl.u32 %v837, 7
      %v839 = vsub.s32 0, %v838
      %v840 = vrot.slane %v835, %v839
      %v858 = vunpack.c.l.b16 %v819
      %v859 = vunpack.c.l.b16 %v820
      %v860 = vunpack.c.l.b16 %v821
      %v861 = vunpack.c.l.b16 %v822
      %v862 = vunpack.c.l.b16 %v823
      %v863 = vunpack.c.l.b16 %v824
      %v864 = vunpack.c.l.b16 %v825
      %v865 = vunpack.c.l.b16 %v826
      %v866 = vunpack.c.l.b16 %v827
      %v867 = vunpack.c.l.b16 %v828
      %v868 = vunpack.c.l.b16 %v829
      %v869 = vunpack.c.l.b16 %v830
      %v870 = vunpack.c.l.b16 %v831
      %v871 = vunpack.c.l.b16 %v832
      %v872 = vunpack.c.l.b16 %v833
      %v873 = vunpack.c.l.b16 %v834
      %v874 = vpack.c.b16 %v859, %v858
      %v875 = vpack.c.b16 %v861, %v860
      %v876 = vpack.c.b16 %v863, %v862
      %v877 = vpack.c.b16 %v865, %v864
      %v878 = vpack.c.b16 %v867, %v866
      %v879 = vpack.c.b16 %v869, %v868
      %v880 = vpack.c.b16 %v871, %v870
      %v881 = vpack.c.b16 %v873, %v872
      %890 = vmatprep.subr.bf16.mxu0 0
      %891 = vmatpush1.bf16.msra.mxu0 %v874
      %892 = vmatprep.subr.bf16.mxu0 0
      %893 = vmatpush1.bf16.msra.mxu0 %v875
      %894 = vmatprep.subr.bf16.mxu0 0
      %895 = vmatpush1.bf16.msra.mxu0 %v876
      %896 = vmatprep.subr.bf16.mxu0 0
      %897 = vmatpush1.bf16.msra.mxu0 %v877
      %898 = vmatprep.subr.bf16.mxu0 0
      %899 = vmatpush1.bf16.msra.mxu0 %v878
      %900 = vmatprep.subr.bf16.mxu0 0
      %901 = vmatpush1.bf16.msra.mxu0 %v879
      %902 = vmatprep.subr.bf16.mxu0 0
      %903 = vmatpush1.bf16.msra.mxu0 %v880
      %904 = vmatprep.subr.bf16.mxu0 0
      %905 = vmatpush1.bf16.msra.mxu0 %v881
      %906 = vmatprep.subr.bf16.mxu0 0
      %907 = vmatpush1.bf16.msra.mxu0 0
      %908 = vmatprep.subr.bf16.mxu0 0
      %909 = vmatpush1.bf16.msra.mxu0 0
      %910 = vmatprep.subr.bf16.mxu0 0
      %911 = vmatpush1.bf16.msra.mxu0 0
      %912 = vmatprep.subr.bf16.mxu0 0
      %913 = vmatpush1.bf16.msra.mxu0 0
      %914 = vmatprep.subr.bf16.mxu0 0
      %915 = vmatpush1.bf16.msra.mxu0 0
      %916 = vmatprep.subr.bf16.mxu0 0
      %917 = vmatpush1.bf16.msra.mxu0 0
      %918 = vmatprep.subr.bf16.mxu0 0
      %919 = vmatpush1.bf16.msra.mxu0 0
      %920 = vmatprep.subr.bf16.mxu0 0
      %921 = vmatpush1.bf16.msra.mxu0 0
      %922 = vmatprep.mubr.bf16.mxu0 0
      %923 = vmatmul.mubr.bf16.gmra.mrb[0].mxu0 %v811
      %v924 = vpop.f32.mrb[0].mxu0
      %v925 = vadd.f32 %v840, %v924
      %v926 = vpop.f32.mrb[0].mxu0
      %v927 = vpop.f32.mrb[0].mxu0
      %v928 = vadd.f32 %v840, %v927
      %v929 = vpop.f32.mrb[0].mxu0
      %930 = vmatprep.mubr.bf16.mxu0 0
      %931 = vmatmul.mubr.bf16.gmra.mrb[0].mxu0 %v812
      %v932 = vpop.f32.mrb[0].mxu0
      %v933 = vadd.f32 %v840, %v932
      %v934 = vpop.f32.mrb[0].mxu0
      %v935 = vpop.f32.mrb[0].mxu0
      %v936 = vadd.f32 %v840, %v935
      %v937 = vpop.f32.mrb[0].mxu0
      %938 = vmatprep.mubr.bf16.mxu0 0
      %939 = vmatmul.mubr.bf16.gmra.mrb[0].mxu0 %v813
      %v940 = vpop.f32.mrb[0].mxu0
      %v941 = vadd.f32 %v840, %v940
      %v942 = vpop.f32.mrb[0].mxu0
      %v943 = vpop.f32.mrb[0].mxu0
      %v944 = vadd.f32 %v840, %v943
      %v945 = vpop.f32.mrb[0].mxu0
      %946 = vmatprep.mubr.bf16.mxu0 0
      %947 = vmatmul.mubr.bf16.gmra.mrb[0].mxu0 %v814
      %v948 = vpop.f32.mrb[0].mxu0
      %v949 = vadd.f32 %v840, %v948
      %v950 = vpop.f32.mrb[0].mxu0
      %v951 = vpop.f32.mrb[0].mxu0
      %v952 = vadd.f32 %v840, %v951
      %v953 = vpop.f32.mrb[0].mxu0
      %954 = vmatprep.mubr.bf16.mxu0 0
      %955 = vmatmul.mubr.bf16.gmra.mrb[0].mxu0 %v815
      %v956 = vpop.f32.mrb[0].mxu0
      %v957 = vadd.f32 %v840, %v956
      %v958 = vpop.f32.mrb[0].mxu0
      %v959 = vpop.f32.mrb[0].mxu0
      %v960 = vadd.f32 %v840, %v959
      %v961 = vpop.f32.mrb[0].mxu0
      %962 = vmatprep.mubr.bf16.mxu0 0
      %963 = vmatmul.mubr.bf16.gmra.mrb[0].mxu0 %v816
      %v964 = vpop.f32.mrb[0].mxu0
      %v965 = vadd.f32 %v840, %v964
      %v966 = vpop.f32.mrb[0].mxu0
      %v967 = vpop.f32.mrb[0].mxu0
      %v968 = vadd.f32 %v840, %v967
      %v969 = vpop.f32.mrb[0].mxu0
      %970 = vmatprep.mubr.bf16.mxu0 0
      %971 = vmatmul.mubr.bf16.gmra.mrb[0].mxu0 %v817
      %v972 = vpop.f32.mrb[0].mxu0
      %v973 = vadd.f32 %v840, %v972
      %v974 = vpop.f32.mrb[0].mxu0
      %v975 = vpop.f32.mrb[0].mxu0
      %v976 = vadd.f32 %v840, %v975
      %v977 = vpop.f32.mrb[0].mxu0
      %978 = vmatprep.mubr.bf16.mxu0 0
      %979 = vmatmul.mubr.bf16.gmra.mrb[0].mxu0 %v818
      %v980 = vpop.f32.mrb[0].mxu0
      %v981 = vadd.f32 %v840, %v980
      %v982 = vpop.f32.mrb[0].mxu0
      %v983 = vpop.f32.mrb[0].mxu0
      %v984 = vadd.f32 %v840, %v983
      %v985 = vpop.f32.mrb[0].mxu0
      %986 = vdwg.mxu0
      %v987 = vmax.f32 %v925, 0.0
      %v988 = vmax.f32 %v928, 0.0
      %v989 = vmax.f32 %v933, 0.0
      %v990 = vmax.f32 %v936, 0.0
      %v991 = vmax.f32 %v941, 0.0
      %v992 = vmax.f32 %v944, 0.0
      %v993 = vmax.f32 %v949, 0.0
      %v994 = vmax.f32 %v952, 0.0
      %v995 = vmax.f32 %v957, 0.0
      %v996 = vmax.f32 %v960, 0.0
      %v997 = vmax.f32 %v965, 0.0
      %v998 = vmax.f32 %v968, 0.0
      %v999 = vmax.f32 %v973, 0.0
      %v1000 = vmax.f32 %v976, 0.0
      %v1001 = vmax.f32 %v981, 0.0
      %v1002 = vmax.f32 %v984, 0.0
      %1003 = vxpose.xlu0.b32.start [1/16] %v987, 128
      %1004 = vxpose.xlu0.b32.cont [2/16] %v988, 128
      %1005 = vxpose.xlu0.b32.cont [3/16] %v989, 128
      %1006 = vxpose.xlu0.b32.cont [4/16] %v990, 128
      %1007 = vxpose.xlu0.b32.cont [5/16] %v991, 128
      %1008 = vxpose.xlu0.b32.cont [6/16] %v992, 128
      %1009 = vxpose.xlu0.b32.cont [7/16] %v993, 128
      %1010 = vxpose.xlu0.b32.cont [8/16] %v994, 128
      %1011 = vxpose.xlu0.b32.cont [9/16] %v995, 128
      %1012 = vxpose.xlu0.b32.cont [10/16] %v996, 128
      %1013 = vxpose.xlu0.b32.cont [11/16] %v997, 128
      %1014 = vxpose.xlu0.b32.cont [12/16] %v998, 128
      %1015 = vxpose.xlu0.b32.cont [13/16] %v999, 128
      %1016 = vxpose.xlu0.b32.cont [14/16] %v1000, 128
      %1017 = vxpose.xlu0.b32.cont [15/16] %v1001, 128
      %1018 = vxpose.xlu0.b32.end [16/16] %v1002, 128
      %v1019 = vpop.trf.xlu0
      %v1020 = vpop.trf.xlu0
      %v1021 = vpop.trf.xlu0
      %v1022 = vpop.trf.xlu0
      %v1023 = vpop.trf.xlu0
      %v1024 = vpop.trf.xlu0
      %v1025 = vpop.trf.xlu0
      %v1026 = vpop.trf.xlu0
      %v1027 = vpop.trf.xlu0
      %v1028 = vpop.trf.xlu0
      %v1029 = vpop.trf.xlu0
      %v1030 = vpop.trf.xlu0
      %v1031 = vpop.trf.xlu0
      %v1032 = vpop.trf.xlu0
      %v1033 = vpop.trf.xlu0
      %v1034 = vpop.trf.xlu0
      %v1035 = vld [vmem:[%s8] sm:$0xff]
      %v1036 = vld [vmem:[%s8 + $0x8] sm:$0xff]
      %v1037 = vld [vmem:[%s8 + $0x10] sm:$0xff]
      %v1038 = vld [vmem:[%s8 + $0x18] sm:$0xff]
      %v1039 = vld [vmem:[%s8 + $0x20] sm:$0xff]
      %v1040 = vld [vmem:[%s8 + $0x28] sm:$0xff]
      %v1041 = vld [vmem:[%s8 + $0x30] sm:$0xff]
      %v1042 = vld [vmem:[%s8 + $0x38] sm:$0xff]
      %v1043 = vld [vmem:[%s8 + $0x40] sm:$0xff]
      %v1044 = vld [vmem:[%s8 + $0x48] sm:$0xff]
      %v1045 = vld [vmem:[%s8 + $0x50] sm:$0xff]
      %v1046 = vld [vmem:[%s8 + $0x58] sm:$0xff]
      %v1047 = vld [vmem:[%s8 + $0x60] sm:$0xff]
      %v1048 = vld [vmem:[%s8 + $0x68] sm:$0xff]
      %v1049 = vld [vmem:[%s8 + $0x70] sm:$0xff]
      %v1050 = vld [vmem:[%s8 + $0x78] sm:$0xff]
      %1052 = vset.pattern.permute.xlu0 0
      %1053 = vperm.xlu0 %1052, %v1035
      %v1054 = vpop.permute.xlu0 %1053
      %1057 = vset.pattern.permute.xlu0 0
      %1058 = vperm.xlu0 %1057, %v1036
      %v1059 = vpop.permute.xlu0 %1058
      %1062 = vset.pattern.permute.xlu0 0
      %1063 = vperm.xlu0 %1062, %v1037
      %v1064 = vpop.permute.xlu0 %1063
      %1067 = vset.pattern.permute.xlu0 0
      %1068 = vperm.xlu0 %1067, %v1038
      %v1069 = vpop.permute.xlu0 %1068
      %1072 = vset.pattern.permute.xlu0 0
      %1073 = vperm.xlu0 %1072, %v1039
      %v1074 = vpop.permute.xlu0 %1073
      %1077 = vset.pattern.permute.xlu0 0
      %1078 = vperm.xlu0 %1077, %v1040
      %v1079 = vpop.permute.xlu0 %1078
      %1082 = vset.pattern.permute.xlu0 0
      %1083 = vperm.xlu0 %1082, %v1041
      %v1084 = vpop.permute.xlu0 %1083
      %1087 = vset.pattern.permute.xlu0 0
      %1088 = vperm.xlu0 %1087, %v1042
      %v1089 = vpop.permute.xlu0 %1088
      %1092 = vset.pattern.permute.xlu0 0
      %1093 = vperm.xlu0 %1092, %v1043
      %v1094 = vpop.permute.xlu0 %1093
      %1097 = vset.pattern.permute.xlu0 0
      %1098 = vperm.xlu0 %1097, %v1044
      %v1099 = vpop.permute.xlu0 %1098
      %1102 = vset.pattern.permute.xlu0 0
      %1103 = vperm.xlu0 %1102, %v1045
      %v1104 = vpop.permute.xlu0 %1103
      %1107 = vset.pattern.permute.xlu0 0
      %1108 = vperm.xlu0 %1107, %v1046
      %v1109 = vpop.permute.xlu0 %1108
      %1112 = vset.pattern.permute.xlu0 0
      %1113 = vperm.xlu0 %1112, %v1047
      %v1114 = vpop.permute.xlu0 %1113
      %1117 = vset.pattern.permute.xlu0 0
      %1118 = vperm.xlu0 %1117, %v1048
      %v1119 = vpop.permute.xlu0 %1118
      %1122 = vset.pattern.permute.xlu0 0
      %1123 = vperm.xlu0 %1122, %v1049
      %v1124 = vpop.permute.xlu0 %1123
      %1127 = vset.pattern.permute.xlu0 0
      %1128 = vperm.xlu0 %1127, %v1050
      %v1129 = vpop.permute.xlu0 %1128
      %v1131 = vmul.f32 %v1019, %v1054
      %v1132 = vmul.f32 %v1020, %v1059
      %v1133 = vmul.f32 %v1021, %v1064
      %v1134 = vmul.f32 %v1022, %v1069
      %v1135 = vmul.f32 %v1023, %v1074
      %v1136 = vmul.f32 %v1024, %v1079
      %v1137 = vmul.f32 %v1025, %v1084
      %v1138 = vmul.f32 %v1026, %v1089
      %v1139 = vmul.f32 %v1027, %v1094
      %v1140 = vmul.f32 %v1028, %v1099
      %v1141 = vmul.f32 %v1029, %v1104
      %v1142 = vmul.f32 %v1030, %v1109
      %v1143 = vmul.f32 %v1031, %v1114
      %v1144 = vmul.f32 %v1032, %v1119
      %v1145 = vmul.f32 %v1033, %v1124
      %v1146 = vmul.f32 %v1034, %v1129
      %v1147 = vadd.f32 %v1131, %v1132
      %v1148 = vadd.f32 %v1147, %v1133
      %v1149 = vadd.f32 %v1148, %v1134
      %v1150 = vadd.f32 %v1149, %v1135
      %v1151 = vadd.f32 %v1150, %v1136
      %v1152 = vadd.f32 %v1151, %v1137
      %v1153 = vadd.f32 %v1152, %v1138
      %v1154 = vadd.f32 %v1153, %v1139
      %v1155 = vadd.f32 %v1154, %v1140
      %v1156 = vadd.f32 %v1155, %v1141
      %v1157 = vadd.f32 %v1156, %v1142
      %v1158 = vadd.f32 %v1157, %v1143
      %v1159 = vadd.f32 %v1158, %v1144
      %v1160 = vadd.f32 %v1159, %v1145
      %v1161 = vadd.f32 %v1160, %v1146
      %v1162 = vrot.slane %v1161, 4
      %v1163 = vadd.f32 %v1161, %v1162
      %v1164 = vrot.slane %v1163, 2
      %v1165 = vadd.f32 %v1163, %v1164
      %v1166 = vrot.slane %v1165, 1
      %v1167 = vadd.f32 %v1165, %v1166
      %v1168 = vld [vmem:[#allocation4] sm:$0x1]
      %1170 = vset.pattern.permute.xlu0 0
      %1171 = vperm.xlu0 %1170, %v1168
      %v1172 = vpop.permute.xlu0 %1171
      %v1174 = vlaneseq
      %v1175 = vshrl.u32 %v1174, 7
      %v1176 = vsub.s32 0, %v1175
      %v1177 = vrot.slane %v1172, %v1176
      %v1178 = vadd.f32 %v1167, %v1177
      %v1179 = vld [vmem:[%s362] sm:$0x1]
      %vm1180 = vcmp.gt.f32.partialorder %v1179, 0.0
      %v1181 = vsel %vm1180, %v1178, -1e+30
      %vm1182 = vcmask 1040384
      %v1183 = vsel %vm1182, %v1181, -inf
      %1184 = vmax.xlane.f32.xlu0 %v1183
      %v1185 = vpop.xlane.xlu0 %1184
      %v1186 = vld [vmem:[#allocation2] sm:$0x1]
      %v1187 = vmax.f32 %v1186, %v1185
      %1189 = vset.pattern.permute.xlu0 0
      %1190 = vperm.xlu0 %1189, %v1187
      %v1191 = vpop.permute.xlu0 %1190
      %v1193 = vlaneseq
      %v1194 = vshrl.u32 %v1193, 7
      %v1195 = vsub.s32 0, %v1194
      %v1196 = vrot.slane %v1191, %v1195
      %v1197 = vsub.f32 %v1181, %v1196
      %v1198 = vmul.f32 %v1197, 1.442695
      %v1199 = vpow.pop %v1198
      %v1200 = vmul.f32 %v1199, %v1179
      %v1201 = vld [vmem:[#allocation3] sm:$0x1]
      %v1202 = vsub.f32 %v1186, %v1187
      %v1203 = vmul.f32 %v1202, 1.442695
      %v1204 = vpow.pop %v1203
      %v1205 = vmul.f32 %v1201, %v1204
      %v1206 = vsel %vm1182, %v1200, 0.0
      %1207 = vadd.xlane.f32.xlu0 %v1206
      %v1208 = vpop.xlane.xlu0 %1207
      %v1209 = vadd.f32 %v1205, %v1208
      %vm1210 = vcmask 0
      %1211 = vst.msk [vmem:[#allocation3] sm:$0x1] %vm1210, %v1209
      %1212 = vst.msk [vmem:[#allocation2] sm:$0x1] %vm1210, %v1187
      %s1213 = scalar_lea.vmem %s10, %s23
      %1214 = vst [vmem:[%s1213] sm:$0x1] %v1181
      %p1215 = scmp.eq.s32.totalorder %s23, 1
      // Predicated region
      $region65: #{_policy_compute.1} parent=59 // pred_check
        %p1216 = pneg %p1215
      $region66: #{_policy_compute.1} parent=59 // pred_check_branch
        %1218 = sbr.rel (%p1216) target = $region68
      $region67: #{_policy_compute.1} parent=59 // pred_region
        %v1219 = vld [vmem:[%s10] sm:$0x3]
        %v1220 = vld [vmem:[#allocation2] sm:$0x1]
        %v1221 = vld [vmem:[#allocation3] sm:$0x1]
        %v1222 = vlog2.pop %v1221
        %v1223 = vmul.f32 %v1222, 0.6931472
        %v1224 = vadd.f32 %v1220, %v1223
        %v1226 = vlaneseq
        %v1227 = vshrl.u32 %v1226, 7
        %v1228 = vsub.s32 0, %v1227
        %v1229 = vrot.slane %v1224, %v1228
        %1230 = vset.pattern.permute.xlu0 0
        %1231 = vperm.xlu0 %1230, %v1229
        %v1232 = vpop.permute.xlu0 %1231
        %v1234 = vsub.f32 %v1219, %v1232
        %1235 = vst [vmem:[%s10] sm:$0x3] %v1234
      $region68: #{_policy_compute.1} parent=59 // pred_fallthru
        _
      // Predicated region
      $region69: #{_policy_compute.1} parent=59 // pred_check
        %p1236 = pneg %p256
      $region70: #{_policy_compute.1} parent=59 // pred_check_branch
        %1238 = sbr.rel (%p1236) target = $region72
      $region71: #{_policy_compute.1} parent=59 // pred_region
        _
      $region72: #{_policy_compute.1} parent=59 // pred_fallthru
        _
      // Predicated region
      $region73: #{_policy_compute.1} parent=59 // pred_check
        %p1239 = pneg %p256
      $region74: #{_policy_compute.1} parent=59 // pred_check_branch
        %1241 = sbr.rel (%p1239) target = $region76
      $region75: #{_policy_compute.1} parent=59 // pred_region
        _
      $region76: #{_policy_compute.1} parent=59 // pred_fallthru
        _
    $region60: #{_policy_compute.1} parent=5 // pred_fallthru
      _
    %p1242 = scmp.le.s32.totalorder 2, %s18
    // Predicated region
    $region77: #{_policy_compute.1} parent=5 // pred_check
      %p1243 = pneg %p1242
    $region78: #{_policy_compute.1} parent=5 // pred_check_branch
      %1245 = sbr.rel (%p1243) target = $region80
    $region79: #{_policy_compute.1} parent=5 // pred_region
      %s1246 = ssub.s32 %s18, 2
    $region80: #{_policy_compute.1} parent=5 // pred_fallthru
      _
  $region6: #{_policy_compute.1} parent=0 // loop_footer
    %s22 = sadd.s32 1, %s18
  $region7: #{_policy_compute.1} parent=0 // loop_footer_branch
    %17 = sbr.rel target = $region3
  $region8: #{_policy_compute.1} parent=0 // loop_exit
    _

</llo_original>
